<compile_context>
chip_gen: v7x
topology: tpu7x:2x2x1
jax: 0.10.0
libtpu: 0.0.40
codegen_flags: <defaults>
</compile_context>

<pallas_src>
import functools

import jax
import jax.numpy as jnp
from jax.experimental import pallas as pl
from jax.experimental.pallas import tpu as pltpu


def _bottleneck_kernel(x_ref, w_ref, b_ref, o_ref, *, H, W, HWp, act, activation):
    """Fused depthwise 3x3 conv + channel-max residual + activation.

    x_ref: (Bt, C, HWp) input block, VMEM (lane-dense flattened spatial axis)
    w_ref: (3, 3) shared conv kernel, SMEM
    b_ref: (1,)   conv bias, SMEM
    o_ref: (Bt, C, HWp) output block, VMEM
    """
    x = x_ref[...].astype(jnp.float32)                      # (Bt, C, HWp)

    # Channel-max residual on the *pre-conv* input (matches the PyTorch module).
    sum_layer = jnp.max(x, axis=1, keepdims=True)           # (Bt, 1, HWp)

    # Boundary masks on the flattened spatial axis (zero-padding semantics of
    # Conv2d(padding=1)). Computed once, broadcast over (Bt, C).
    idx = jax.lax.broadcasted_iota(jnp.int32, (1, 1, HWp), 2)
    col = idx % W
    row_ok_up = idx >= W                  # row h-1 exists
    row_ok_dn = idx < (H - 1) * W         # row h+1 exists
    col_ok_l = col >= 1                   # col w-1 exists
    col_ok_r = col <= W - 2               # col w+1 exists

    # Horizontal neighbours, pre-masked once.  roll(x, s)[i] == x[i - s].
    xl = jnp.where(col_ok_l, pltpu.roll(x, 1, axis=2), 0.0)        # x[h, w-1]
    xr = jnp.where(col_ok_r, pltpu.roll(x, HWp - 1, axis=2), 0.0)  # x[h, w+1]

    w = w_ref  # (3, 3) scalar reads from SMEM

    # Center row combo + bias + channel-max residual in one pass.
    acc = (w[1, 0] * xl + w[1, 1] * x + w[1, 2] * xr) + (sum_layer + b_ref[0])

    # Upper row (h-1): horizontal combo shifted down by one row, masked.
    g = w[0, 0] * xl + w[0, 1] * x + w[0, 2] * xr
    acc = acc + jnp.where(row_ok_up, pltpu.roll(g, W, axis=2), 0.0)

    # Lower row (h+1): horizontal combo shifted up by one row, masked.
    g = w[2, 0] * xl + w[2, 1] * x + w[2, 2] * xr
    acc = acc + jnp.where(row_ok_dn, pltpu.roll(g, HWp - W, axis=2), 0.0)

    if act:
        if activation == "relu":
            acc = jnp.maximum(acc, 0.0)
        elif activation == "lrelu":
            acc = jnp.where(acc >= 0.0, acc, 0.01 * acc)   # PyTorch default slope
        elif activation == "tanh":
            acc = jnp.tanh(acc)

    o_ref[...] = acc.astype(o_ref.dtype)


def _pick_block_batch(n, per_sample_bytes, target_bytes=2 << 20, min_steps=4):
    """Pick how many samples go into one grid block (~2 MiB per input block)."""
    bt = max(1, min(n, int(target_bytes // max(per_sample_bytes, 1))))
    # Keep enough grid steps for pipelining / cross-core sharding.
    want = min(min_steps, n)
    while bt > 1 and pl.cdiv(n, bt) < want:
        bt -= 1
    # Prefer an exact divisor of N so no partial boundary block is needed.
    while bt > 1 and n % bt != 0:
        bt -= 1
    return bt


def bottleneck_block_forward(x, weight, bias, act: bool = True,
                             activation: str = "relu"):
    """x: (N, C, H, W); weight: (3, 3); bias: (1,).  Returns (N, C, H, W)."""
    N, C, H, W = x.shape
    HW = H * W
    HWp = ((HW + 127) // 128) * 128         # keep the lane dim a multiple of 128

    # Free reshape (NCHW is row-major): lane-dense last dim = H*W.
    xf = x.reshape(N, C, HW)
    if HWp != HW:
        xf = jnp.pad(xf, ((0, 0), (0, 0), (0, HWp - HW)))

    # NOTE: C is presented as a full (untiled) block dim, so C % 8 != 0 is
    # legal; it just wastes sublanes.  Pad C to a multiple of 8 upstream for
    # best VPU/XLU utilization on channel-heavy feature maps.
    per_sample_bytes = C * HWp * xf.dtype.itemsize
    Bt = _pick_block_batch(N, per_sample_bytes)
    grid = (N // Bt,)

    weight = weight.astype(jnp.float32)
    bias = bias.astype(jnp.float32)

    kernel = functools.partial(_bottleneck_kernel, H=H, W=W, HWp=HWp,
                               act=act, activation=activation)

    n_elem = N * C * HW
    cost = pl.CostEstimate(
        flops=21 * n_elem,     # 3x3 conv MACs + bias + residual + max + act
        transcendentals=(n_elem if (act and activation == "tanh") else 0),
        bytes_accessed=2 * N * C * HWp * xf.dtype.itemsize,
    )

    out = pl.pallas_call(
        kernel,
        out_shape=jax.ShapeDtypeStruct((N, C, HWp), x.dtype),
        grid=grid,
        in_specs=[
            # Full C per block so the channel-max stays local to the block.
            pl.BlockSpec((Bt, C, HWp), lambda n: (n, 0, 0)),
            pl.BlockSpec(memory_space=pltpu.MemorySpace.SMEM),   # 3x3 weight
            pl.BlockSpec(memory_space=pltpu.MemorySpace.SMEM),   # bias
        ],
        out_specs=pl.BlockSpec((Bt, C, HWp), lambda n: (n, 0, 0)),
        compiler_params=pltpu.CompilerParams(
            # Batch-block axis is independent -> shard across TensorCores.
            dimension_semantics=("parallel",),
            # Blocks are capped at ~2 MiB; 48 MiB leaves headroom on every gen
            # (v7x: 64 MiB physical, v5e/v6e: 128 MiB).
            vmem_limit_bytes=48 * 1024 * 1024,
        ),
        cost_estimate=cost,
    )(xf, weight, bias)

    if HWp != HW:
        out = out[:, :, :HW]
    return out.reshape(N, C, H, W)


def _reference(x, weight, bias, act=True, activation="relu"):
    """Pure-JAX reference mirroring the PyTorch forward."""
    sum_layer = jnp.max(x, axis=1, keepdims=True)
    N, C, H, W = x.shape
    xr = x.reshape(N * C, 1, H, W)
    conv = jax.lax.conv_general_dilated(
        xr, weight.reshape(1, 1, 3, 3), window_strides=(1, 1),
        padding=((1, 1), (1, 1)),
        dimension_numbers=("NCHW", "OIHW", "NCHW"))
    out = conv.reshape(N, C, H, W) + bias[0] + sum_layer
    if act:
        if activation == "relu":
            out = jnp.maximum(out, 0.0)
        elif activation == "lrelu":
            out = jnp.where(out >= 0.0, out, 0.01 * out)
        elif activation == "tanh":
            out = jnp.tanh(out)
    return out


if __name__ == "__main__":
    key = jax.random.PRNGKey(0)
    kx, kw, kb = jax.random.split(key, 3)

    # Small shapes consistent with the module's forward (NCHW).
    N, C, H, W = 2, 4, 16, 16
    x = jax.random.normal(kx, (N, C, H, W), dtype=jnp.float32)

    # Deterministic Conv2d(1, 1, 3, 3) parameters (kaiming-uniform-like range).
    bound = 1.0 / 3.0  # 1/sqrt(fan_in), fan_in = 1*3*3
    weight = jax.random.uniform(kw, (3, 3), minval=-bound, maxval=bound,
                                dtype=jnp.float32)
    bias = jax.random.uniform(kb, (1,), minval=-bound, maxval=bound,
                              dtype=jnp.float32)

    # Validate every activation branch + the act=False path against the ref.
    for act_flag, act_name in [(True, "relu"), (True, "lrelu"),
                               (True, "tanh"), (False, "relu")]:
        out = bottleneck_block_forward(x, weight, bias, act=act_flag,
                                       activation=act_name)
        out = jax.block_until_ready(out)
        ref = _reference(x, weight, bias, act=act_flag, activation=act_name)
        assert out.shape == (N, C, H, W)
        err = float(jnp.max(jnp.abs(out - ref)))
        assert jnp.allclose(out, ref, atol=1e-5, rtol=1e-5), (act_name, err)

    print("KERNEL_OK")
</pallas_src>

<mosaic_0001>
module attributes {stable_mosaic.version = 11 : i64} {
  func.func @_bottleneck_kernel(%arg0: i32, %arg1: memref<1x4x256xf32, #tpu.memory_space<vmem>>, %arg2: memref<3x3xf32, #tpu.memory_space<smem>>, %arg3: memref<1xf32, #tpu.memory_space<smem>>, %arg4: memref<1x4x256xf32, #tpu.memory_space<vmem>>) attributes {dimension_semantics = [#tpu.dimension_semantics<parallel>], iteration_bounds = array<i64: 2>, scalar_prefetch = 0 : i64, scratch_operands = 0 : i64, tpu.core_type = #tpu.core_type<tc>, window_params = [{transform_indices = @transform_0, window_bounds = array<i64: 1, 4, 256>}, {transform_indices = @transform_1, window_bounds = array<i64: 3, 3>}, {transform_indices = @transform_2, window_bounds = array<i64: 1>}, {transform_indices = @transform_3, window_bounds = array<i64: 1, 4, 256>}]} {
    %c0 = arith.constant 0 : index
    %c0_0 = arith.constant 0 : index
    %c0_1 = arith.constant 0 : index
    %0 = vector.load %arg1[%c0, %c0_0, %c0_1] : memref<1x4x256xf32, #tpu.memory_space<vmem>>, vector<1x4x256xf32>
    %cst = arith.constant dense<0xFF800000> : vector<1x256xf32>
    %1 = vector.multi_reduction <maximumf>, %0, %cst [1] : vector<1x4x256xf32> to vector<1x256xf32>
    %2 = vector.shape_cast %1 : vector<1x256xf32> to vector<1x1x256xf32>
    %3 = tpu.iota {dimensions = array<i32: 2>} : vector<1x1x256xi32>
    %c16_i32 = arith.constant 16 : i32
    %c0_i32 = arith.constant 0 : i32
    %4 = arith.cmpi eq, %c16_i32, %c0_i32 : i32
    %c1_i32 = arith.constant 1 : i32
    %5 = arith.select %4, %c1_i32, %c16_i32 : i32
    %6 = vector.broadcast %5 : i32 to vector<1x1x256xi32>
    %7 = arith.remsi %3, %6 : vector<1x1x256xi32>
    %c0_i32_2 = arith.constant 0 : i32
    %8 = vector.broadcast %c0_i32_2 : i32 to vector<1x1x256xi32>
    %9 = arith.cmpi ne, %7, %8 : vector<1x1x256xi32>
    %c0_i32_3 = arith.constant 0 : i32
    %10 = vector.broadcast %c0_i32_3 : i32 to vector<1x1x256xi32>
    %11 = arith.cmpi slt, %7, %10 : vector<1x1x256xi32>
    %c0_i32_4 = arith.constant 0 : i32
    %12 = arith.cmpi slt, %5, %c0_i32_4 : i32
    %13 = vector.broadcast %12 : i1 to vector<1x1x256xi1>
    %14 = vector.broadcast %13 : vector<1x1x256xi1> to vector<1x1x256xi1>
    %15 = arith.xori %11, %14 : vector<1x1x256xi1>
    %16 = arith.andi %15, %9 : vector<1x1x256xi1>
    %17 = vector.broadcast %5 : i32 to vector<1x1x256xi32>
    %18 = arith.addi %7, %17 : vector<1x1x256xi32>
    %19 = arith.select %16, %18, %7 : vector<1x1x256xi1>, vector<1x1x256xi32>
    %c16_i32_5 = arith.constant 16 : i32
    %20 = vector.broadcast %c16_i32_5 : i32 to vector<1x1x256xi32>
    %21 = arith.cmpi sge, %3, %20 : vector<1x1x256xi32>
    %c240_i32 = arith.constant 240 : i32
    %22 = vector.broadcast %c240_i32 : i32 to vector<1x1x256xi32>
    %23 = arith.cmpi slt, %3, %22 : vector<1x1x256xi32>
    %c1_i32_6 = arith.constant 1 : i32
    %24 = vector.broadcast %c1_i32_6 : i32 to vector<1x1x256xi32>
    %25 = arith.cmpi sge, %19, %24 : vector<1x1x256xi32>
    %c14_i32 = arith.constant 14 : i32
    %26 = vector.broadcast %c14_i32 : i32 to vector<1x1x256xi32>
    %27 = arith.cmpi sle, %19, %26 : vector<1x1x256xi32>
    %c1_i32_7 = arith.constant 1 : i32
    %28 = tpu.dynamic_rotate %0 by %c1_i32_7 dim 2 : vector<1x4x256xf32>, i32 -> vector<1x4x256xf32>
    %cst_8 = arith.constant 0.000000e+00 : f32
    %29 = vector.shape_cast %25 : vector<1x1x256xi1> to vector<1x1x256xi1>
    %30 = vector.broadcast %29 : vector<1x1x256xi1> to vector<1x4x256xi1>
    %31 = vector.broadcast %cst_8 : f32 to vector<1x4x256xf32>
    %32 = arith.select %30, %28, %31 : vector<1x4x256xi1>, vector<1x4x256xf32>
    %c255_i32 = arith.constant 255 : i32
    %33 = tpu.dynamic_rotate %0 by %c255_i32 dim 2 : vector<1x4x256xf32>, i32 -> vector<1x4x256xf32>
    %cst_9 = arith.constant 0.000000e+00 : f32
    %34 = vector.shape_cast %27 : vector<1x1x256xi1> to vector<1x1x256xi1>
    %35 = vector.broadcast %34 : vector<1x1x256xi1> to vector<1x4x256xi1>
    %36 = vector.broadcast %cst_9 : f32 to vector<1x4x256xf32>
    %37 = arith.select %35, %33, %36 : vector<1x4x256xi1>, vector<1x4x256xf32>
    %c1 = arith.constant 1 : index
    %c0_10 = arith.constant 0 : index
    %38 = memref.load %arg2[%c1, %c0_10] : memref<3x3xf32, #tpu.memory_space<smem>>
    %39 = vector.broadcast %38 : f32 to vector<1x4x256xf32>
    %40 = arith.mulf %39, %32 : vector<1x4x256xf32>
    %c1_11 = arith.constant 1 : index
    %c1_12 = arith.constant 1 : index
    %41 = memref.load %arg2[%c1_11, %c1_12] : memref<3x3xf32, #tpu.memory_space<smem>>
    %42 = vector.broadcast %41 : f32 to vector<1x4x256xf32>
    %43 = arith.mulf %42, %0 : vector<1x4x256xf32>
    %44 = arith.addf %40, %43 : vector<1x4x256xf32>
    %c1_13 = arith.constant 1 : index
    %c2 = arith.constant 2 : index
    %45 = memref.load %arg2[%c1_13, %c2] : memref<3x3xf32, #tpu.memory_space<smem>>
    %46 = vector.broadcast %45 : f32 to vector<1x4x256xf32>
    %47 = arith.mulf %46, %37 : vector<1x4x256xf32>
    %48 = arith.addf %44, %47 : vector<1x4x256xf32>
    %c0_14 = arith.constant 0 : index
    %49 = memref.load %arg3[%c0_14] : memref<1xf32, #tpu.memory_space<smem>>
    %50 = vector.broadcast %49 : f32 to vector<1x1x256xf32>
    %51 = arith.addf %2, %50 : vector<1x1x256xf32>
    %52 = vector.broadcast %51 : vector<1x1x256xf32> to vector<1x4x256xf32>
    %53 = arith.addf %48, %52 : vector<1x4x256xf32>
    %c0_15 = arith.constant 0 : index
    %c0_16 = arith.constant 0 : index
    %54 = memref.load %arg2[%c0_15, %c0_16] : memref<3x3xf32, #tpu.memory_space<smem>>
    %55 = vector.broadcast %54 : f32 to vector<1x4x256xf32>
    %56 = arith.mulf %55, %32 : vector<1x4x256xf32>
    %c0_17 = arith.constant 0 : index
    %c1_18 = arith.constant 1 : index
    %57 = memref.load %arg2[%c0_17, %c1_18] : memref<3x3xf32, #tpu.memory_space<smem>>
    %58 = vector.broadcast %57 : f32 to vector<1x4x256xf32>
    %59 = arith.mulf %58, %0 : vector<1x4x256xf32>
    %60 = arith.addf %56, %59 : vector<1x4x256xf32>
    %c0_19 = arith.constant 0 : index
    %c2_20 = arith.constant 2 : index
    %61 = memref.load %arg2[%c0_19, %c2_20] : memref<3x3xf32, #tpu.memory_space<smem>>
    %62 = vector.broadcast %61 : f32 to vector<1x4x256xf32>
    %63 = arith.mulf %62, %37 : vector<1x4x256xf32>
    %64 = arith.addf %60, %63 : vector<1x4x256xf32>
    %c16_i32_21 = arith.constant 16 : i32
    %65 = tpu.dynamic_rotate %64 by %c16_i32_21 dim 2 : vector<1x4x256xf32>, i32 -> vector<1x4x256xf32>
    %cst_22 = arith.constant 0.000000e+00 : f32
    %66 = vector.shape_cast %21 : vector<1x1x256xi1> to vector<1x1x256xi1>
    %67 = vector.broadcast %66 : vector<1x1x256xi1> to vector<1x4x256xi1>
    %68 = vector.broadcast %cst_22 : f32 to vector<1x4x256xf32>
    %69 = arith.select %67, %65, %68 : vector<1x4x256xi1>, vector<1x4x256xf32>
    %70 = arith.addf %53, %69 : vector<1x4x256xf32>
    %c2_23 = arith.constant 2 : index
    %c0_24 = arith.constant 0 : index
    %71 = memref.load %arg2[%c2_23, %c0_24] : memref<3x3xf32, #tpu.memory_space<smem>>
    %72 = vector.broadcast %71 : f32 to vector<1x4x256xf32>
    %73 = arith.mulf %72, %32 : vector<1x4x256xf32>
    %c2_25 = arith.constant 2 : index
    %c1_26 = arith.constant 1 : index
    %74 = memref.load %arg2[%c2_25, %c1_26] : memref<3x3xf32, #tpu.memory_space<smem>>
    %75 = vector.broadcast %74 : f32 to vector<1x4x256xf32>
    %76 = arith.mulf %75, %0 : vector<1x4x256xf32>
    %77 = arith.addf %73, %76 : vector<1x4x256xf32>
    %c2_27 = arith.constant 2 : index
    %c2_28 = arith.constant 2 : index
    %78 = memref.load %arg2[%c2_27, %c2_28] : memref<3x3xf32, #tpu.memory_space<smem>>
    %79 = vector.broadcast %78 : f32 to vector<1x4x256xf32>
    %80 = arith.mulf %79, %37 : vector<1x4x256xf32>
    %81 = arith.addf %77, %80 : vector<1x4x256xf32>
    %c240_i32_29 = arith.constant 240 : i32
    %82 = tpu.dynamic_rotate %81 by %c240_i32_29 dim 2 : vector<1x4x256xf32>, i32 -> vector<1x4x256xf32>
    %cst_30 = arith.constant 0.000000e+00 : f32
    %83 = vector.shape_cast %23 : vector<1x1x256xi1> to vector<1x1x256xi1>
    %84 = vector.broadcast %83 : vector<1x1x256xi1> to vector<1x4x256xi1>
    %85 = vector.broadcast %cst_30 : f32 to vector<1x4x256xf32>
    %86 = arith.select %84, %82, %85 : vector<1x4x256xi1>, vector<1x4x256xf32>
    %87 = arith.addf %70, %86 : vector<1x4x256xf32>
    %cst_31 = arith.constant 0.000000e+00 : f32
    %88 = vector.broadcast %cst_31 : f32 to vector<1x4x256xf32>
    %89 = arith.maximumf %87, %88 : vector<1x4x256xf32>
    %c0_32 = arith.constant 0 : index
    %c0_33 = arith.constant 0 : index
    %c0_34 = arith.constant 0 : index
    %90 = vector.load %arg4[%c0_32, %c0_33, %c0_34] : memref<1x4x256xf32, #tpu.memory_space<vmem>>, vector<1x4x256xf32>
    tpu.vector_store %arg4[%c0_32, %c0_33, %c0_34], %89 {strides = array<i32>} : memref<1x4x256xf32, #tpu.memory_space<vmem>>, vector<1x4x256xf32>,
    return
  }
  func.func @transform_0(%arg0: i32) -> (i32, i32, i32) {
    %c0_i32 = arith.constant 0 : i32
    %c0_i32_0 = arith.constant 0 : i32
    %c0_i32_1 = arith.constant 0 : i32
    return %arg0, %c0_i32, %c0_i32_0 : i32, i32, i32
  }
  func.func @transform_1(%arg0: i32) -> (i32, i32) {
    %c0_i32 = arith.constant 0 : i32
    %c0_i32_0 = arith.constant 0 : i32
    %c0_i32_1 = arith.constant 0 : i32
    return %c0_i32, %c0_i32_0 : i32, i32
  }
  func.func @transform_2(%arg0: i32) -> i32 {
    %c0_i32 = arith.constant 0 : i32
    %c0_i32_0 = arith.constant 0 : i32
    return %c0_i32 : i32
  }
  func.func @transform_3(%arg0: i32) -> (i32, i32, i32) {
    %c0_i32 = arith.constant 0 : i32
    %c0_i32_0 = arith.constant 0 : i32
    %c0_i32_1 = arith.constant 0 : i32
    return %arg0, %c0_i32, %c0_i32_0 : i32, i32, i32
  }
}

</mosaic_0001>

<llo_original>
// kernel: tpu_custom_call.1
$region0: #{tpu_custom_call.1}
  #allocation0 [shape = 'u32[]', space=smem, size = 0x4, offset = 0x4, fixed_abs, tag = 'smem constant byte address 0x4 - core index']
  #allocation1 [shape = 'u32[144,128]{1,0:T(1,128)}', space=vmem, size = 0x12000, scoped, tag = 'internal scratch']
  #allocation2 [shape = 'f32[1]{0:T(128)S(6)}', space=smem, size = 0x200, scoped, tag = 'scoped memory for tpu_custom_call.1']
  %s0 = inlined_call_operand.hbm [shape: f32[2,4,256], index: 0, kind: input, shape index: {}]
  %s1 = inlined_call_operand.vmem [shape: f32[3,3], index: 1, kind: input, shape index: {}]
  %s2 = inlined_call_operand.<no memory space> [shape: f32[1], index: 2, kind: input, shape index: {}]
  %s3 = inlined_call_operand.hbm [shape: f32[2,4,256], index: 3, kind: output, shape index: {}]
  %s4 = sld [smem:[#allocation0]]
  $region53: #{tpu_custom_call.1} parent=0
    _
  %s6 = ssub.s32 1, %s4
  %s7 = scalar_select 0, %s6, %s4
  %8 = sst [smem:[#allocation2]] %s2
  $region1: #{tpu_custom_call.1} parent=0
    #allocation3 [shape = 'u8[8192]{0}', space=vmem, size = 0x2000, scoped, tag = 'input window, operand 0']
    #allocation4 [shape = 's32[2]{0}', space=sflag, size = 0x8, scoped, tag = 'scoped memory for tpu_custom_call.1']
    #allocation5 [shape = 's32[2]{0}', space=sflag, size = 0x8, scoped, tag = 'scoped memory for tpu_custom_call.1']
    #allocation6 [shape = 's32[2]{0}', space=sflag, size = 0x8, scoped, tag = 'scoped memory for tpu_custom_call.1']
    #allocation7 [shape = 'u8[2048]{0}', space=smem, size = 0x800, scoped, tag = 'input window, operand 1, single buffered']
    #allocation8 [shape = 'u8[8192]{0}', space=vmem, size = 0x2000, scoped, tag = 'output window, operand 0']
    %9 = vsyncpa [#allocation4], 0
    %s10 = scalar_lea.sflag [#allocation4], 1
    %11 = vsyncpa %s10, 0
    %12 = vsyncpa [#allocation6], 0
    %13 = vsyncpa [#allocation5], 0
    %s14 = scalar_lea.sflag [#allocation5], 1
    %15 = vsyncpa %s14, 0
    loop: start=0, step=1, limit=4
    $region2: #{tpu_custom_call.1} parent=1 // loop_pre_header
      _
    $region3: #{tpu_custom_call.1} parent=1 // loop_header
      %s17 = sphi 0, %s21
      %p18 = scmp.ge.s32.totalorder %s17, 4
      %s27 = sphi 0, %s29
      %s30 = sphi 0, %s27
      %s31 = sphi 0, %s30
      %s47 = sphi 0, %s31
      %s51 = sphi 0, %s51
      %s53 = sphi 0, %s51
      %s54 = sphi 0, %s53
      %s68 = sphi 0, %s54
      %s72 = sphi 0, %s72
      %s74 = sphi 0, %s72
      %s75 = sphi 0, %s74
      %s89 = sphi 0, %s75
      %s95 = sphi 0, %s97
      %s98 = sphi 0, %s95
      %s99 = sphi 0, %s98
      %s115 = sphi 0, %s99
    $region4: #{tpu_custom_call.1} parent=1 // loop_header_branch
      %20 = sbr.rel (%p18) target = $region8
    $region5: #{tpu_custom_call.1} parent=1 // loop_body
      %s22 = ssub.s32 %s17, 1
      %s23 = ssub.s32 %s17, 2
      %s24 = sadd.s32 %s17, 1
      %s25 = ssub.s32 %s17, %s24
      %p26 = scmp.eq.s32.totalorder %s25, 0
      %s28 = sadd.s32 %s27, 1
      %s29 = scalar_select %p26, %s27, %s28
      %p32 = pneg %p26
      %p33 = scmp.eq.s32.totalorder %s17, 1
      %p34 = por %p32, %p33
      %p35 = scmp.ne.s32.totalorder %s27, %s30
      %p36 = scmp.eq.s32.totalorder %s17, 0
      %p37 = por %p35, %p36
      %p38 = scmp.ne.s32.totalorder %s27, %s30
      %p39 = scmp.eq.s32.totalorder %s22, 1
      %p40 = por %p38, %p39
      %p41 = scmp.ne.s32.totalorder %s30, %s31
      %p42 = scmp.eq.s32.totalorder %s22, 0
      %p43 = por %p41, %p42
      %p44 = scmp.ne.s32.totalorder %s30, %s31
      %p45 = scmp.eq.s32.totalorder %s23, 1
      %p46 = por %p44, %p45
      %p48 = scmp.ne.s32.totalorder %s31, %s47
      %p49 = scmp.eq.s32.totalorder %s23, 0
      %p50 = por %p48, %p49
      %s52 = sadd.s32 %s51, 1
      %p55 = scmp.eq.s32.totalorder %s17, 1
      %p56 = scmp.ne.s32.totalorder %s51, %s53
      %p57 = scmp.eq.s32.totalorder %s17, 0
      %p58 = por %p56, %p57
      %p59 = scmp.ne.s32.totalorder %s51, %s53
      %p60 = scmp.eq.s32.totalorder %s22, 1
      %p61 = por %p59, %p60
      %p62 = scmp.ne.s32.totalorder %s53, %s54
      %p63 = scmp.eq.s32.totalorder %s22, 0
      %p64 = por %p62, %p63
      %p65 = scmp.ne.s32.totalorder %s53, %s54
      %p66 = scmp.eq.s32.totalorder %s23, 1
      %p67 = por %p65, %p66
      %p69 = scmp.ne.s32.totalorder %s54, %s68
      %p70 = scmp.eq.s32.totalorder %s23, 0
      %p71 = por %p69, %p70
      %s73 = sadd.s32 %s72, 1
      %p76 = scmp.eq.s32.totalorder %s17, 1
      %p77 = scmp.ne.s32.totalorder %s72, %s74
      %p78 = scmp.eq.s32.totalorder %s17, 0
      %p79 = por %p77, %p78
      %p80 = scmp.ne.s32.totalorder %s72, %s74
      %p81 = scmp.eq.s32.totalorder %s22, 1
      %p82 = por %p80, %p81
      %p83 = scmp.ne.s32.totalorder %s74, %s75
      %p84 = scmp.eq.s32.totalorder %s22, 0
      %p85 = por %p83, %p84
      %p86 = scmp.ne.s32.totalorder %s74, %s75
      %p87 = scmp.eq.s32.totalorder %s23, 1
      %p88 = por %p86, %p87
      %p90 = scmp.ne.s32.totalorder %s75, %s89
      %p91 = scmp.eq.s32.totalorder %s23, 0
      %p92 = por %p90, %p91
      %s93 = ssub.s32 %s17, %s24
      %p94 = scmp.eq.s32.totalorder %s93, 0
      %s96 = sadd.s32 %s95, 1
      %s97 = scalar_select %p94, %s95, %s96
      %p100 = pneg %p94
      %p101 = scmp.eq.s32.totalorder %s17, 1
      %p102 = por %p100, %p101
      %p103 = scmp.ne.s32.totalorder %s95, %s98
      %p104 = scmp.eq.s32.totalorder %s17, 0
      %p105 = por %p103, %p104
      %p106 = scmp.ne.s32.totalorder %s95, %s98
      %p107 = scmp.eq.s32.totalorder %s22, 1
      %p108 = por %p106, %p107
      %p109 = scmp.ne.s32.totalorder %s98, %s99
      %p110 = scmp.eq.s32.totalorder %s22, 0
      %p111 = por %p109, %p110
      %p112 = scmp.ne.s32.totalorder %s98, %s99
      %p113 = scmp.eq.s32.totalorder %s23, 1
      %p114 = por %p112, %p113
      %p116 = scmp.ne.s32.totalorder %s99, %s115
      %p117 = scmp.eq.s32.totalorder %s23, 0
      %p118 = por %p116, %p117
      %p119 = scmp.le.s32.totalorder 1, %s17
      %p120 = scmp.lt.s32.totalorder %s17, 3
      %p121 = pnand %p119, %p120
      %p122 = pneg %p121
      // Predicated region
      $region9: #{tpu_custom_call.1} parent=5 // pred_check
        _
      $region10: #{tpu_custom_call.1} parent=5 // pred_check_branch
        %124 = sbr.rel (%p121) target = $region12
      $region11: #{tpu_custom_call.1} parent=5 // pred_region
        %s125 = ssub.s32 %s17, 1
        // Predicated region
        $region13: #{tpu_custom_call.1} parent=11 // pred_check
          %p126 = pneg %p64
        $region14: #{tpu_custom_call.1} parent=11 // pred_check_branch
          %128 = sbr.rel (%p126) target = $region16
        $region15: #{tpu_custom_call.1} parent=11 // pred_region
          %s130 = ssub.s32 64, 64
          %131 = vsyncadd [#allocation6], %s130
          %s133 = sshll.u32 %s1, 4
          %s134 = int_to_ptr.vmem [resolvable:$true] %s133
          %136 = dma.vmem_to_smem %s134, 64, [#allocation7], [#allocation6]
        $region16: #{tpu_custom_call.1} parent=11 // pred_fallthru
          _
        // Predicated region
        $region17: #{tpu_custom_call.1} parent=11 // pred_check
          %p137 = pneg %p85
        $region18: #{tpu_custom_call.1} parent=11 // pred_check_branch
          %139 = sbr.rel (%p137) target = $region20
        $region19: #{tpu_custom_call.1} parent=11 // pred_region
          _
        $region20: #{tpu_custom_call.1} parent=11 // pred_fallthru
          _
      $region12: #{tpu_custom_call.1} parent=5 // pred_fallthru
        _
      %p140 = scmp.lt.s32.totalorder %s17, 2
      // Predicated region
      $region21: #{tpu_custom_call.1} parent=5 // pred_check
        %p141 = pneg %p140
      $region22: #{tpu_custom_call.1} parent=5 // pred_check_branch
        %143 = sbr.rel (%p141) target = $region24
      $region23: #{tpu_custom_call.1} parent=5 // pred_region
        // Predicated region
        $region25: #{tpu_custom_call.1} parent=23 // pred_check
          %p144 = pneg %p37
        $region26: #{tpu_custom_call.1} parent=23 // pred_check_branch
          %146 = sbr.rel (%p144) target = $region28
        $region27: #{tpu_custom_call.1} parent=23 // pred_region
          %s147 = sand.u32 %s27, 1
          %s148 = scalar_lea.sflag [#allocation4], %s147
          %s149 = sand.u32 %s27, 1
          %s150 = smul.addr %s149, 8
          %s151 = scalar_lea.vmem [#allocation3], %s150
          %s153 = ssub.s32 128, 128
          %154 = vsyncadd %s148, %s153
          %s155 = smul.addr %s17, 2
          %s156 = smul.addr %s155, 64
          %s157 = scalar_lea.hbm %s0, %s156
          %s159 = sshll.u32 %s151, 4
          %s160 = int_to_ptr.vmem [resolvable:$true] %s159
          %162 = dma.hbm_to_vmem [thread:$0]  %s157, 128, %s160, %s148
        $region28: #{tpu_custom_call.1} parent=23 // pred_fallthru
          _
      $region24: #{tpu_custom_call.1} parent=5 // pred_fallthru
        _
      %p163 = scmp.le.s32.totalorder 1, %s17
      %p164 = scmp.lt.s32.totalorder %s17, 3
      %p165 = pnand %p163, %p164
      %p166 = pneg %p165
      // Predicated region
      $region29: #{tpu_custom_call.1} parent=5 // pred_check
        _
      $region30: #{tpu_custom_call.1} parent=5 // pred_check_branch
        %168 = sbr.rel (%p165) target = $region32
      $region31: #{tpu_custom_call.1} parent=5 // pred_region
        %s169 = ssub.s32 %s17, 1
        %s170 = sand.u32 %s30, 1
        %s171 = scalar_lea.sflag [#allocation4], %s170
        %s172 = sand.u32 %s30, 1
        %s173 = smul.addr %s172, 8
        %s174 = scalar_lea.vmem [#allocation3], %s173
        // Predicated region
        $region33: #{tpu_custom_call.1} parent=31 // pred_check
          %p175 = pneg %p43
        $region34: #{tpu_custom_call.1} parent=31 // pred_check_branch
          %177 = sbr.rel (%p175) target = $region36
        $region35: #{tpu_custom_call.1} parent=31 // pred_region
          %178 = dma.done %s171, 128
        $region36: #{tpu_custom_call.1} parent=31 // pred_fallthru
          _
        // Predicated region
        $region37: #{tpu_custom_call.1} parent=31 // pred_check
          %p179 = pneg %p64
        $region38: #{tpu_custom_call.1} parent=31 // pred_check_branch
          %181 = sbr.rel (%p179) target = $region40
        $region39: #{tpu_custom_call.1} parent=31 // pred_region
          %182 = dma.done [#allocation6], 64
        $region40: #{tpu_custom_call.1} parent=31 // pred_fallthru
          _
        %183 = sfence
        %s184 = sand.u32 %s30, 1
        %s185 = scalar_lea.sflag [#allocation4], %s184
        %s186 = sand.u32 %s30, 1
        %s187 = smul.addr %s186, 8
        %s188 = scalar_lea.vmem [#allocation3], %s187
        %p189 = pneg %p43
        %p190 = pneg %p40
        %p191 = pneg %p64
        %p192 = pneg %p61
        %p193 = pneg %p85
        %p194 = pneg %p82
        %p195 = pneg %p111
        %p196 = pneg %p108
        %s197 = sand.u32 %s98, 1
        %s198 = scalar_lea.sflag [#allocation5], %s197
        %s199 = sand.u32 %s98, 1
        %s200 = smul.addr %s199, 8
        %s201 = scalar_lea.vmem [#allocation8], %s200
        %v202 = vld [vmem:[%s174] sm:$0xff]
        %v204 = vcombine.high %v202, %v202
        %vm206 = vcmask 1043456
        %v207 = vsel %vm206, %v202, -inf
        %v208 = vrot.slane %v207, 4
        %v209 = vmax.f32 %v207, %v208
        %v210 = vrot.slane %v209, 2
        %v211 = vmax.f32 %v209, %v210
        %v212 = vrot.slane %v211, 1
        %v213 = vmax.f32 %v211, %v212
        %v214 = vsel %vm206, %v204, -inf
        %v215 = vrot.slane %v214, 4
        %v216 = vmax.f32 %v214, %v215
        %v217 = vrot.slane %v216, 2
        %v218 = vmax.f32 %v216, %v217
        %v219 = vrot.slane %v218, 1
        %v220 = vmax.f32 %v218, %v219
        %v221 = vlaneseq
        %v222 = vand.u32 %v221, 127
        %v223 = vadd.s32 %v222, 128
        %vm224 = vcmp.lt.s32.totalorder %v222, 0
        %v225 = vsub.s32 0, %v222
        %v226 = vsel %vm224, %v225, %v222
        %v227 = vshrl.u32 %v226, 4
        %v228 = vand.u32 %v226, 15
        %v229 = vsub.s32 0, %v228
        %v230 = vsel %vm224, %v229, %v228
        %vm231 = vcmp.lt.s32.totalorder %v223, 0
        %v232 = vsub.s32 0, %v223
        %v233 = vsel %vm231, %v232, %v223
        %v234 = vshrl.u32 %v233, 4
        %v235 = vand.u32 %v233, 15
        %v236 = vsub.s32 0, %v235
        %v237 = vsel %vm231, %v236, %v235
        %vm238 = vcmp.ne.s32.totalorder %v230, 0
        %vm239 = vcmp.ne.s32.totalorder %v237, 0
        %vm240 = vcmp.lt.s32.totalorder %v230, 0
        %vm241 = vcmp.lt.s32.totalorder %v237, 0
        %vm242 = vmand %vm240, %vm238
        %vm243 = vmand %vm241, %vm239
        %v244 = vadd.s32 %v230, 16
        %v245 = vadd.s32 %v237, 16
        %v246 = vsel %vm242, %v244, %v230
        %v247 = vsel %vm243, %v245, %v237
        %vm248 = vcmp.ge.s32.totalorder %v222, 16
        %vm249 = vcmp.ge.s32.totalorder %v223, 16
        %vm250 = vcmp.lt.s32.totalorder %v222, 240
        %vm251 = vcmp.lt.s32.totalorder %v223, 240
        %vm252 = vcmp.ge.s32.totalorder %v246, 1
        %vm253 = vcmp.ge.s32.totalorder %v247, 1
        %vm254 = vcmp.le.s32.totalorder %v246, 14
        %vm255 = vcmp.le.s32.totalorder %v247, 14
        %256 = vrot.lane.b32.xlu0 %v202, 1
        %v257 = vpop.permute.xlu0 %256
        %258 = vrot.lane.b32.xlu0 %v204, 1
        %v259 = vpop.permute.xlu0 %258
        %vm260 = vcmp.lt.s32.totalorder %v222, 1
        %v261 = vsel %vm260, %v257, %v259
        %v262 = vsel %vm260, %v259, %v257
        %v263 = vsel %vm252, 1, 0
        %v264 = vsel %vm253, 1, 0
        %vm265 = vcmp.eq.s32.totalorder %v263, 1
        %vm266 = vcmp.eq.s32.totalorder %v264, 1
        %v267 = vsel %vm265, %v262, 0.0
        %v268 = vsel %vm266, %v261, 0.0
        %269 = vrot.lane.b32.xlu0 %v202, 127
        %v270 = vpop.permute.xlu0 %269
        %271 = vrot.lane.b32.xlu0 %v204, 127
        %v272 = vpop.permute.xlu0 %271
        %vm273 = vcmp.lt.s32.totalorder %v222, 127
        %v274 = vsel %vm273, %v270, %v272
        %v275 = vsel %vm273, %v272, %v270
        %v276 = vsel %vm254, 1, 0
        %v277 = vsel %vm255, 1, 0
        %vm278 = vcmp.eq.s32.totalorder %v276, 1
        %vm279 = vcmp.eq.s32.totalorder %v277, 1
        %v280 = vsel %vm278, %v274, 0.0
        %v281 = vsel %vm279, %v275, 0.0
        %s282 = sld [smem:[#allocation7 + $0x80]]
        %v283 = vstv %s282
        %v284 = vmul.f32 %v283, %v267
        %v285 = vmul.f32 %v283, %v268
        %s286 = sld [smem:[#allocation7 + $0x81]]
        %v287 = vstv %s286
        %v288 = vmul.f32 %v287, %v202
        %v290 = vcombine.high %v288, %v288
        %v292 = vadd.f32 %v284, %v288
        %v293 = vadd.f32 %v285, %v290
        %s294 = sld [smem:[#allocation7 + $0x82]]
        %v295 = vstv %s294
        %v296 = vmul.f32 %v295, %v280
        %v297 = vmul.f32 %v295, %v281
        %v298 = vadd.f32 %v292, %v296
        %v299 = vadd.f32 %v293, %v297
        %s300 = sld [smem:[#allocation2]]
        %v301 = vstv %s300
        %v302 = vadd.f32 %v213, %v301
        %v303 = vadd.f32 %v220, %v301
        %v304 = vadd.f32 %v298, %v302
        %v305 = vadd.f32 %v299, %v303
        %s306 = sld [smem:[#allocation7]]
        %v307 = vstv %s306
        %v308 = vmul.f32 %v307, %v267
        %v309 = vmul.f32 %v307, %v268
        %s310 = sld [smem:[#allocation7 + $0x1]]
        %v311 = vstv %s310
        %v312 = vmul.f32 %v311, %v202
        %v314 = vcombine.high %v312, %v312
        %v316 = vadd.f32 %v308, %v312
        %v317 = vadd.f32 %v309, %v314
        %s318 = sld [smem:[#allocation7 + $0x2]]
        %v319 = vstv %s318
        %v320 = vmul.f32 %v319, %v280
        %v321 = vmul.f32 %v319, %v281
        %v322 = vadd.f32 %v316, %v320
        %v323 = vadd.f32 %v317, %v321
        %324 = vrot.lane.b32.xlu0 %v322, 16
        %v325 = vpop.permute.xlu0 %324
        %326 = vrot.lane.b32.xlu0 %v323, 16
        %v327 = vpop.permute.xlu0 %326
        %vm328 = vcmp.lt.s32.totalorder %v222, 16
        %v329 = vsel %vm328, %v325, %v327
        %v330 = vsel %vm328, %v327, %v325
        %v331 = vsel %vm248, 1, 0
        %v332 = vsel %vm249, 1, 0
        %vm333 = vcmp.eq.s32.totalorder %v331, 1
        %vm334 = vcmp.eq.s32.totalorder %v332, 1
        %v335 = vsel %vm333, %v330, 0.0
        %v336 = vsel %vm334, %v329, 0.0
        %v337 = vadd.f32 %v304, %v335
        %v338 = vadd.f32 %v305, %v336
        %s339 = sld [smem:[#allocation7 + $0x100]]
        %v340 = vstv %s339
        %v341 = vmul.f32 %v340, %v267
        %v342 = vmul.f32 %v340, %v268
        %s343 = sld [smem:[#allocation7 + $0x101]]
        %v344 = vstv %s343
        %v345 = vmul.f32 %v344, %v202
        %v347 = vcombine.high %v345, %v345
        %v349 = vadd.f32 %v341, %v345
        %v350 = vadd.f32 %v342, %v347
        %s351 = sld [smem:[#allocation7 + $0x102]]
        %v352 = vstv %s351
        %v353 = vmul.f32 %v352, %v280
        %v354 = vmul.f32 %v352, %v281
        %v355 = vadd.f32 %v349, %v353
        %v356 = vadd.f32 %v350, %v354
        %357 = vrot.lane.b32.xlu0 %v355, 112
        %v358 = vpop.permute.xlu0 %357
        %359 = vrot.lane.b32.xlu0 %v356, 112
        %v360 = vpop.permute.xlu0 %359
        %vm361 = vcmp.lt.s32.totalorder %v222, 112
        %v362 = vsel %vm361, %v358, %v360
        %v363 = vsel %vm361, %v360, %v358
        %v364 = vsel %vm250, 1, 0
        %v365 = vsel %vm251, 1, 0
        %vm366 = vcmp.eq.s32.totalorder %v364, 1
        %vm367 = vcmp.eq.s32.totalorder %v365, 1
        %v368 = vsel %vm366, %v362, 0.0
        %v369 = vsel %vm367, %v363, 0.0
        %v370 = vadd.f32 %v337, %v368
        %v371 = vadd.f32 %v338, %v369
        %v372 = vmax.f32 %v370, 0.0
        %v373 = vmax.f32 %v371, 0.0
        %v376 = vcombine.low %v372, %v373
        %378 = vst [vmem:[%s201] sm:$0xff] %v376
        %s379 = sand.u32 %s98, 1
        %s380 = scalar_lea.sflag [#allocation5], %s379
        %s381 = sand.u32 %s98, 1
        %s382 = smul.addr %s381, 8
        %s383 = scalar_lea.vmem [#allocation8], %s382
        // Predicated region
        $region41: #{tpu_custom_call.1} parent=31 // pred_check
          %p384 = pneg %p108
        $region42: #{tpu_custom_call.1} parent=31 // pred_check_branch
          %386 = sbr.rel (%p384) target = $region44
        $region43: #{tpu_custom_call.1} parent=31 // pred_region
          %s388 = ssub.s32 128, 128
          %389 = vsyncadd %s380, %s388
          %s390 = smul.addr %s22, 2
          %s391 = smul.addr %s390, 64
          %s392 = scalar_lea.hbm %s3, %s391
          %s394 = sshll.u32 %s383, 4
          %s395 = int_to_ptr.vmem [resolvable:$true] %s394
          %397 = dma.vmem_to_hbm [thread:$0]  %s395, 128, %s392, %s380
        $region44: #{tpu_custom_call.1} parent=31 // pred_fallthru
          _
      $region32: #{tpu_custom_call.1} parent=5 // pred_fallthru
        _
      %p398 = scmp.le.s32.totalorder 2, %s17
      // Predicated region
      $region45: #{tpu_custom_call.1} parent=5 // pred_check
        %p399 = pneg %p398
      $region46: #{tpu_custom_call.1} parent=5 // pred_check_branch
        %401 = sbr.rel (%p399) target = $region48
      $region47: #{tpu_custom_call.1} parent=5 // pred_region
        %s402 = ssub.s32 %s17, 2
        // Predicated region
        $region49: #{tpu_custom_call.1} parent=47 // pred_check
          %p403 = pneg %p114
        $region50: #{tpu_custom_call.1} parent=47 // pred_check_branch
          %405 = sbr.rel (%p403) target = $region52
        $region51: #{tpu_custom_call.1} parent=47 // pred_region
          %s406 = sand.u32 %s99, 1
          %s407 = scalar_lea.sflag [#allocation5], %s406
          %s408 = sand.u32 %s99, 1
          %s409 = smul.addr %s408, 8
          %s410 = scalar_lea.vmem [#allocation8], %s409
          %411 = dma.done %s407, 128
        $region52: #{tpu_custom_call.1} parent=47 // pred_fallthru
          _
      $region48: #{tpu_custom_call.1} parent=5 // pred_fallthru
        _
    $region6: #{tpu_custom_call.1} parent=1 // loop_footer
      %s21 = sadd.s32 1, %s17
    $region7: #{tpu_custom_call.1} parent=1 // loop_footer_branch
      %16 = sbr.rel target = $region3
    $region8: #{tpu_custom_call.1} parent=1 // loop_exit
      _
    %412 = vsyncpa [#allocation4], 1
    %s413 = scalar_lea.sflag [#allocation4], 1
    %414 = vsyncpa %s413, 1
    %415 = vsyncpa [#allocation5], 1
    %s416 = scalar_lea.sflag [#allocation5], 1
    %417 = vsyncpa %s416, 1
    %418 = vsyncpa [#allocation6], 1
    %s419 = scalar_lea.sflag [#allocation6], 1
    %420 = vsyncpa %s419, 1

</llo_original>
